<compile_context>
chip_gen: v7x
topology: tpu7x:2x2x1
jax: 0.10.0
libtpu: 0.0.40
codegen_flags: <defaults>
</compile_context>

<pallas_src>
import functools

import jax
import jax.numpy as jnp
import numpy as np
from jax.experimental import pallas as pl
from jax.experimental.pallas import tpu as pltpu


# ----------------------------- Pallas kernel -------------------------------

def _merged_convT_gelu_kernel(x_ref, w_ref, o_ref, xpad_ref, *,
                              n_shifts, pad_left, lin, base, lq_tile,
                              one_tile, approx_gelu):
    # x_ref:    (1, Cin, Lin)              raw (unpadded) input row for this batch element
    # w_ref:    (s*Cout, n_shifts*Cin+1)   merged phase/shift weights, last column = bias
    # o_ref:    (1, s*Cout, lq_tile)       phase-stacked output tile
    # xpad_ref: (Cin, Lp)                  VMEM scratch holding the zero-padded row

    # Fill the padded-row scratch once per batch row (first length tile only).
    @pl.when(pl.program_id(1) == 0)
    def _():
        xpad_ref[...] = jnp.zeros_like(xpad_ref)
        xpad_ref[:, pad_left:pad_left + lin] = x_ref[0]

    if one_tile:
        q0 = 0                                                     # static slicing path
    else:
        q0 = pl.multiple_of(pl.program_id(1) * lq_tile, lq_tile)   # length-tile offset

    # Distinct-shift tap matrix (n_shifts*Cin + 1, lq_tile); the ones row folds the bias.
    taps = [xpad_ref[:, pl.ds(q0 + base + i, lq_tile)] for i in range(n_shifts)]
    taps.append(jnp.ones((1, lq_tile), dtype=xpad_ref.dtype))
    xs = jnp.concatenate(taps, axis=0)

    # One MXU matmul covering all phases; accumulate in f32.
    acc = jnp.dot(w_ref[...], xs, preferred_element_type=jnp.float32)   # (s*Cout, lq_tile)

    if approx_gelu:
        # tanh-based GELU: transcendental goes to the EUP slot (VALU relief on v6e/v7x).
        c0 = jnp.float32(0.7978845608028654)  # sqrt(2/pi)
        y = 0.5 * acc * (1.0 + jnp.tanh(c0 * (acc + 0.044715 * acc * acc * acc)))
    else:
        # exact erf-GELU, matching torch.nn.functional.gelu default (f32 epilogue).
        y = 0.5 * acc * (1.0 + jax.lax.erf(acc * jnp.float32(0.7071067811865476)))
    o_ref[0] = y.astype(o_ref.dtype)


# ------------------------ weight repack (hoisted, numpy) ---------------------

def _pack_polyphase_weights(weight, bias, *, stride, padding):
    """Repack ConvTranspose1d weights into one merged phase x distinct-shift matrix."""
    weight = np.asarray(weight, np.float32)            # (Cin, Cout, K)
    bias = np.asarray(bias, np.float32)                # (Cout,)
    cin, cout, k_sz = weight.shape
    s = int(stride)
    j_taps = -(-k_sz // s)                             # taps per phase (ceil)
    r = [(m + padding) % s for m in range(s)]
    c = [(m + padding - r[m]) // s for m in range(s)]
    d_min = min(c) - (j_taps - 1)
    n_shifts = max(c) - d_min + 1                      # distinct input shifts (~(c_max-c_min)+J)
    d = n_shifts * cin
    w_m = np.zeros((s * cout, d + 1), np.float32)
    for m in range(s):
        for i in range(n_shifts):
            j = c[m] - d_min - i
            k = r[m] + j * s
            if 0 <= j < j_taps and k < k_sz:
                w_m[m * cout:(m + 1) * cout, i * cin:(i + 1) * cin] = weight[:, :, k].T
    w_m[:, d] = np.tile(bias, s)                       # bias folded as the last column
    meta = dict(cin=cin, cout=cout, k_sz=k_sz, stride=s,
                n_shifts=n_shifts, d_min=int(d_min), c_max=int(max(c)))
    return w_m, meta


# ------------------------------ layer factory --------------------------------

def make_transpose1d_layer(weight, bias, *, stride, padding=11, output_padding=1,
                           compute_dtype=jnp.float32, lq_tile_max=512,
                           approx_gelu=False):
    """Build forward(x, mask) with weights repacked once (hoisted out of the jit path)."""
    w_np, meta = _pack_polyphase_weights(weight, bias, stride=stride, padding=padding)
    cin, cout, k_sz = meta["cin"], meta["cout"], meta["k_sz"]
    s = meta["stride"]
    n_shifts, d_min, c_max = meta["n_shifts"], meta["d_min"], meta["c_max"]
    d_cols = n_shifts * cin + 1
    w_packed = jnp.asarray(w_np, dtype=compute_dtype)

    def forward(x, mask=None):
        del mask                                       # unused by the reference forward
        n_b, cin_x, l_in = x.shape
        assert cin_x == cin
        l_out = (l_in - 1) * s - 2 * padding + k_sz + output_padding
        l_q = -(-l_out // s)                           # per-phase output length
        if l_q <= lq_tile_max:
            lq_tile, n_qt = l_q, 1
        else:
            lq_tile = lq_tile_max
            n_qt = -(-l_q // lq_tile)
        l_qp = lq_tile * n_qt

        pad_left = max(0, -d_min)
        pad_right = max(0, c_max + l_qp - l_in)
        l_p = l_in + pad_left + pad_right
        base = pad_left + d_min                        # >= 0 by construction

        itemsize = np.dtype(compute_dtype).itemsize
        footprint = (2 * cin * l_in * itemsize                 # x block (double buffered)
                     + 2 * s * cout * d_cols * itemsize        # packed weights
                     + 2 * s * cout * lq_tile * 4              # output block (f32)
                     + cin * l_p * itemsize                    # padded-row scratch
                     + 4 * (d_cols + s * cout) * lq_tile * 4)  # in-kernel temporaries
        vmem_limit = int(min(100 * 2**20, max(16 * 2**20, 4 * footprint)))

        kernel = functools.partial(
            _merged_convT_gelu_kernel, n_shifts=n_shifts, pad_left=pad_left,
            lin=l_in, base=base, lq_tile=lq_tile, one_tile=(n_qt == 1),
            approx_gelu=approx_gelu)

        out = pl.pallas_call(
            kernel,
            out_shape=jax.ShapeDtypeStruct((n_b, s * cout, l_qp), jnp.float32),
            grid_spec=pltpu.PrefetchScalarGridSpec(
                num_scalar_prefetch=0,
                grid=(n_b, n_qt),                      # batch (parallel) x length tiles
                in_specs=[
                    pl.BlockSpec((1, cin, l_in), lambda n, q: (n, 0, 0)),   # row resident over q
                    pl.BlockSpec((s * cout, d_cols), lambda n, q: (0, 0)),  # weights resident
                ],
                out_specs=pl.BlockSpec((1, s * cout, lq_tile), lambda n, q: (n, 0, q)),
                scratch_shapes=[pltpu.VMEM((cin, l_p), compute_dtype)],
            ),
            compiler_params=pltpu.CompilerParams(
                dimension_semantics=("parallel", "arbitrary"),
                vmem_limit_bytes=vmem_limit,
            ),
        )(x.astype(compute_dtype), w_packed)

        # Phase interleave: y[n, co, q*s+m] = out[n, m*Cout+co, q].
        # The reshapes are free; the transpose is one output-sized XLA op (see TODO above).
        y = out.reshape(n_b, s, cout, l_qp).transpose(0, 2, 3, 1).reshape(n_b, cout, l_qp * s)
        if l_qp * s != l_out:                          # no-op for the default config
            y = y[:, :, :l_out]
        return y

    return forward


# ------------------------- pure-JAX reference (check) ------------------------

def _ref_forward(x, weight, bias, *, stride, padding, output_padding):
    n_b, cin, l_in = x.shape
    _, cout, k_sz = weight.shape
    l_out = (l_in - 1) * stride - 2 * padding + k_sz + output_padding
    y = jnp.zeros((n_b, cout, l_out + 2 * padding), jnp.float32)
    for k in range(k_sz):
        contrib = jnp.einsum('ncl,cd->ndl', x, weight[:, :, k])
        y = y.at[:, :, k:k + (l_in - 1) * stride + 1:stride].add(contrib)
    y = y[:, :, padding:padding + l_out] + bias[None, :, None]
    return 0.5 * y * (1.0 + jax.lax.erf(y * 0.7071067811865476))


# ---------------------------------- main -------------------------------------

if __name__ == "__main__":
    # module config (typical WaveGAN-style transposed conv): L_out = 4 * L_in
    input_channels = 4
    output_channels = 8
    kernel_size = 25
    stride = 4
    padding = 11
    output_padding = 1

    N, L_in = 2, 16

    key = jax.random.PRNGKey(0)
    kx, km, kw, kb = jax.random.split(key, 4)
    x = jax.random.normal(kx, (N, input_channels, L_in), dtype=jnp.float32)
    mask = jax.random.normal(km, (N, 1, L_in), dtype=jnp.float32)   # unused by forward
    weight = 0.02 * jax.random.normal(
        kw, (input_channels, output_channels, kernel_size), dtype=jnp.float32)
    bias = 0.02 * jax.random.normal(kb, (output_channels,), dtype=jnp.float32)

    # Weight repack happens here, once, outside the jitted per-call path.
    layer = make_transpose1d_layer(np.asarray(weight), np.asarray(bias),
                                   stride=stride, padding=padding,
                                   output_padding=output_padding)
    fwd = jax.jit(layer)
    y = jax.block_until_ready(fwd(x, mask))

    y_ref = _ref_forward(x, weight, bias, stride=stride, padding=padding,
                         output_padding=output_padding)
    np.testing.assert_allclose(np.asarray(y), np.asarray(y_ref), rtol=1e-4, atol=1e-4)
    expected_L_out = (L_in - 1) * stride - 2 * padding + kernel_size + output_padding
    assert y.shape == (N, output_channels, expected_L_out)

    print("KERNEL_OK")
</pallas_src>

<mosaic_0001>
module attributes {stable_mosaic.version = 11 : i64} {
  func.func @_merged_convT_gelu_kernel(%arg0: i32, %arg1: i32, %arg2: memref<1x4x16xf32, #tpu.memory_space<vmem>>, %arg3: memref<32x33xf32, #tpu.memory_space<vmem>>, %arg4: memref<1x32x16xf32, #tpu.memory_space<vmem>>, %arg5: memref<4x23xf32, #tpu.memory_space<vmem>>) attributes {dimension_semantics = [#tpu.dimension_semantics<parallel>, #tpu.dimension_semantics<arbitrary>], iteration_bounds = array<i64: 2, 1>, scalar_prefetch = 0 : i64, scratch_operands = 1 : i64, tpu.core_type = #tpu.core_type<tc>, window_params = [{transform_indices = @transform_0, window_bounds = array<i64: 1, 4, 16>}, {pipeline_mode = #tpu.pipeline_mode<synchronous>, transform_indices = @transform_1, window_bounds = array<i64: 32, 33>}, {transform_indices = @transform_2, window_bounds = array<i64: 1, 32, 16>}]} {
    %c0_i32 = arith.constant 0 : i32
    %0 = arith.cmpi eq, %arg1, %c0_i32 : i32
    %1 = arith.extui %0 : i1 to i32
    %c0_i32_0 = arith.constant 0 : i32
    %2 = arith.cmpi ne, %1, %c0_i32_0 : i32
    scf.if %2 {
      %cst_18 = arith.constant 0.000000e+00 : f32
      %26 = vector.broadcast %cst_18 : f32 to vector<4x23xf32>
      %c0_19 = arith.constant 0 : index
      %c0_20 = arith.constant 0 : index
      %27 = vector.load %arg5[%c0_19, %c0_20] : memref<4x23xf32, #tpu.memory_space<vmem>>, vector<4x23xf32>
      tpu.vector_store %arg5[%c0_19, %c0_20], %26 {strides = array<i32>} : memref<4x23xf32, #tpu.memory_space<vmem>>, vector<4x23xf32>,
      %c0_21 = arith.constant 0 : index
      %c0_22 = arith.constant 0 : index
      %c0_23 = arith.constant 0 : index
      %28 = vector.load %arg2[%c0_21, %c0_22, %c0_23] : memref<1x4x16xf32, #tpu.memory_space<vmem>>, vector<1x4x16xf32>
      %29 = vector.shape_cast %28 : vector<1x4x16xf32> to vector<4x16xf32>
      %c0_24 = arith.constant 0 : index
      %c4_25 = arith.constant 4 : index
      %30 = vector.load %arg5[%c0_24, %c4_25] : memref<4x23xf32, #tpu.memory_space<vmem>>, vector<4x16xf32>
      tpu.vector_store %arg5[%c0_24, %c4_25], %29 {strides = array<i32>} : memref<4x23xf32, #tpu.memory_space<vmem>>, vector<4x16xf32>,
    } else {
    }
    %c0 = arith.constant 0 : index
    %c0_1 = arith.constant 0 : index
    %3 = vector.load %arg5[%c0, %c0_1] : memref<4x23xf32, #tpu.memory_space<vmem>>, vector<4x16xf32>
    %c0_2 = arith.constant 0 : index
    %c1 = arith.constant 1 : index
    %4 = vector.load %arg5[%c0_2, %c1] : memref<4x23xf32, #tpu.memory_space<vmem>>, vector<4x16xf32>
    %c0_3 = arith.constant 0 : index
    %c2 = arith.constant 2 : index
    %5 = vector.load %arg5[%c0_3, %c2] : memref<4x23xf32, #tpu.memory_space<vmem>>, vector<4x16xf32>
    %c0_4 = arith.constant 0 : index
    %c3 = arith.constant 3 : index
    %6 = vector.load %arg5[%c0_4, %c3] : memref<4x23xf32, #tpu.memory_space<vmem>>, vector<4x16xf32>
    %c0_5 = arith.constant 0 : index
    %c4 = arith.constant 4 : index
    %7 = vector.load %arg5[%c0_5, %c4] : memref<4x23xf32, #tpu.memory_space<vmem>>, vector<4x16xf32>
    %c0_6 = arith.constant 0 : index
    %c5 = arith.constant 5 : index
    %8 = vector.load %arg5[%c0_6, %c5] : memref<4x23xf32, #tpu.memory_space<vmem>>, vector<4x16xf32>
    %c0_7 = arith.constant 0 : index
    %c6 = arith.constant 6 : index
    %9 = vector.load %arg5[%c0_7, %c6] : memref<4x23xf32, #tpu.memory_space<vmem>>, vector<4x16xf32>
    %c0_8 = arith.constant 0 : index
    %c7 = arith.constant 7 : index
    %10 = vector.load %arg5[%c0_8, %c7] : memref<4x23xf32, #tpu.memory_space<vmem>>, vector<4x16xf32>
    %cst = arith.constant 1.000000e+00 : f32
    %11 = vector.broadcast %cst : f32 to vector<1x16xf32>
    %12 = tpu.concatenate %3, %4, %5, %6, %7, %8, %9, %10, %11 in 0 : vector<4x16xf32>, vector<4x16xf32>, vector<4x16xf32>, vector<4x16xf32>, vector<4x16xf32>, vector<4x16xf32>, vector<4x16xf32>, vector<4x16xf32>, vector<1x16xf32> -> vector<33x16xf32>
    %c0_9 = arith.constant 0 : index
    %c0_10 = arith.constant 0 : index
    %13 = vector.load %arg3[%c0_9, %c0_10] : memref<32x33xf32, #tpu.memory_space<vmem>>, vector<32x33xf32>
    %cst_11 = arith.constant dense<0.000000e+00> : vector<32x16xf32>
    %14 = tpu.matmul %13, %12, %cst_11 {dimension_numbers = #tpu.dot_dimension_numbers<[1], [0], [0], [1], [0, 0, 1, 1], [], []>} : vector<32x33xf32>, vector<33x16xf32>, vector<32x16xf32> -> vector<32x16xf32>
    %cst_12 = arith.constant 5.000000e-01 : f32
    %15 = vector.broadcast %cst_12 : f32 to vector<32x16xf32>
    %16 = arith.mulf %15, %14 : vector<32x16xf32>
    %cst_13 = arith.constant 0.707106769 : f32
    %17 = vector.broadcast %cst_13 : f32 to vector<32x16xf32>
    %18 = arith.mulf %14, %17 : vector<32x16xf32>
    %19 = math.erf %18 : vector<32x16xf32>
    %cst_14 = arith.constant 1.000000e+00 : f32
    %20 = vector.broadcast %cst_14 : f32 to vector<32x16xf32>
    %21 = arith.addf %20, %19 : vector<32x16xf32>
    %22 = arith.mulf %16, %21 : vector<32x16xf32>
    %c0_15 = arith.constant 0 : index
    %c0_16 = arith.constant 0 : index
    %c0_17 = arith.constant 0 : index
    %23 = vector.load %arg4[%c0_15, %c0_16, %c0_17] : memref<1x32x16xf32, #tpu.memory_space<vmem>>, vector<1x32x16xf32>
    %24 = vector.shape_cast %23 : vector<1x32x16xf32> to vector<32x16xf32>
    %25 = vector.shape_cast %22 : vector<32x16xf32> to vector<1x32x16xf32>
    tpu.vector_store %arg4[%c0_15, %c0_16, %c0_17], %25 {strides = array<i32>} : memref<1x32x16xf32, #tpu.memory_space<vmem>>, vector<1x32x16xf32>,
    return
  }
  func.func @transform_0(%arg0: i32, %arg1: i32) -> (i32, i32, i32) {
    %c0_i32 = arith.constant 0 : i32
    %c0_i32_0 = arith.constant 0 : i32
    %c0_i32_1 = arith.constant 0 : i32
    return %arg0, %c0_i32, %c0_i32_0 : i32, i32, i32
  }
  func.func @transform_1(%arg0: i32, %arg1: i32) -> (i32, i32) {
    %c0_i32 = arith.constant 0 : i32
    %c0_i32_0 = arith.constant 0 : i32
    %c0_i32_1 = arith.constant 0 : i32
    return %c0_i32, %c0_i32_0 : i32, i32
  }
  func.func @transform_2(%arg0: i32, %arg1: i32) -> (i32, i32, i32) {
    %c0_i32 = arith.constant 0 : i32
    %c0_i32_0 = arith.constant 0 : i32
    return %arg0, %c0_i32, %arg1 : i32, i32, i32
  }
}

</mosaic_0001>

<llo_original>
// kernel: forward.1
$region0: #{forward.1}
  #allocation0 [shape = 'u32[]', space=smem, size = 0x4, offset = 0x4, fixed_abs, tag = 'smem constant byte address 0x4 - core index']
  #allocation1 [shape = 'u32[144,128]{1,0:T(1,128)}', space=vmem, size = 0x12000, scoped, tag = 'internal scratch']
  #allocation2 [shape = 'f32[4,23]{1,0:T(4,128)}', space=vmem, size = 0x800, scoped, tag = 'scratch operand']
  %s0 = inlined_call_operand.hbm [shape: f32[2,4,16], index: 0, kind: input, shape index: {}]
  %s1 = inlined_call_operand.hbm [shape: f32[32,33], index: 1, kind: input, shape index: {}]
  %s2 = inlined_call_operand.vmem [shape: f32[2,32,16], index: 2, kind: output, shape index: {}]
  %s3 = sld [smem:[#allocation0]]
  $region53: #{forward.1} parent=0
    _
  %s5 = ssub.s32 1, %s3
  %s6 = scalar_select 0, %s5, %s3
  $region1: #{forward.1} parent=0
    #allocation3 [shape = 'u8[4096]{0}', space=vmem, size = 0x1000, scoped, tag = 'input window, operand 0']
    #allocation4 [shape = 's32[2]{0}', space=sflag, size = 0x8, scoped, tag = 'scoped memory for forward.1']
    #allocation5 [shape = 'u8[16384]{0}', space=vmem, size = 0x4000, scoped, tag = 'input window, operand 1, single buffered']
    #allocation6 [shape = 's32[1]{0}', space=sflag, size = 0x4, scoped, tag = 'scoped memory for forward.1']
    %7 = vsyncpa [#allocation4], 0
    %s8 = scalar_lea.sflag [#allocation4], 1
    %9 = vsyncpa %s8, 0
    %10 = vsyncpa [#allocation6], 0
    loop: start=0, step=1, limit=4
    $region2: #{forward.1} parent=1 // loop_pre_header
      _
    $region3: #{forward.1} parent=1 // loop_header
      %s12 = sphi 0, %s16
      %p13 = scmp.ge.s32.totalorder %s12, 4
      %s19 = sphi 0, %s31
      %s20 = sphi 0, %s27
      %s21 = sphi 0, %s19
      %s22 = sphi 0, %s20
      %s23 = sphi 0, %s21
      %s24 = sphi 0, %s22
      %s34 = sphi 0, %s36
      %s37 = sphi 0, %s34
      %s38 = sphi 0, %s37
      %s54 = sphi 0, %s38
      %s58 = sphi 0, %s58
      %s60 = sphi 0, %s58
      %s61 = sphi 0, %s60
      %s75 = sphi 0, %s61
      %s83 = sphi 0, %s85
      %s86 = sphi 0, %s83
      %s87 = sphi 0, %s86
      %s103 = sphi 0, %s87
    $region4: #{forward.1} parent=1 // loop_header_branch
      %15 = sbr.rel (%p13) target = $region8
    $region5: #{forward.1} parent=1 // loop_body
      %s17 = ssub.s32 %s12, 1
      %s18 = ssub.s32 %s12, 2
      %s25 = sadd.s32 1, %s20
      %p26 = scmp.ge.s32.totalorder %s25, 1
      %s27 = scalar_select %p26, 0, %s25
      %s28 = sadd.s32 1, %s19
      %s29 = scalar_select %p26, %s28, %s19
      %p30 = scmp.ge.s32.totalorder %s29, 2
      %s31 = scalar_select %p30, 0, %s29
      %s32 = ssub.s32 %s19, %s31
      %p33 = scmp.eq.s32.totalorder %s32, 0
      %s35 = sadd.s32 %s34, 1
      %s36 = scalar_select %p33, %s34, %s35
      %p39 = pneg %p33
      %p40 = scmp.eq.s32.totalorder %s12, 1
      %p41 = por %p39, %p40
      %p42 = scmp.ne.s32.totalorder %s34, %s37
      %p43 = scmp.eq.s32.totalorder %s12, 0
      %p44 = por %p42, %p43
      %p45 = scmp.ne.s32.totalorder %s34, %s37
      %p46 = scmp.eq.s32.totalorder %s17, 1
      %p47 = por %p45, %p46
      %p48 = scmp.ne.s32.totalorder %s37, %s38
      %p49 = scmp.eq.s32.totalorder %s17, 0
      %p50 = por %p48, %p49
      %p51 = scmp.ne.s32.totalorder %s37, %s38
      %p52 = scmp.eq.s32.totalorder %s18, 1
      %p53 = por %p51, %p52
      %p55 = scmp.ne.s32.totalorder %s38, %s54
      %p56 = scmp.eq.s32.totalorder %s18, 0
      %p57 = por %p55, %p56
      %s59 = sadd.s32 %s58, 1
      %p62 = scmp.eq.s32.totalorder %s12, 1
      %p63 = scmp.ne.s32.totalorder %s58, %s60
      %p64 = scmp.eq.s32.totalorder %s12, 0
      %p65 = por %p63, %p64
      %p66 = scmp.ne.s32.totalorder %s58, %s60
      %p67 = scmp.eq.s32.totalorder %s17, 1
      %p68 = por %p66, %p67
      %p69 = scmp.ne.s32.totalorder %s60, %s61
      %p70 = scmp.eq.s32.totalorder %s17, 0
      %p71 = por %p69, %p70
      %p72 = scmp.ne.s32.totalorder %s60, %s61
      %p73 = scmp.eq.s32.totalorder %s18, 1
      %p74 = por %p72, %p73
      %p76 = scmp.ne.s32.totalorder %s61, %s75
      %p77 = scmp.eq.s32.totalorder %s18, 0
      %p78 = por %p76, %p77
      %s79 = ssub.s32 %s19, %s31
      %s80 = ssub.s32 %s20, %s27
      %s81 = sor.u32 %s79, %s80
      %p82 = scmp.eq.s32.totalorder %s81, 0
      %s84 = sadd.s32 %s83, 1
      %s85 = scalar_select %p82, %s83, %s84
      %p88 = pneg %p82
      %p89 = scmp.eq.s32.totalorder %s12, 1
      %p90 = por %p88, %p89
      %p91 = scmp.ne.s32.totalorder %s83, %s86
      %p92 = scmp.eq.s32.totalorder %s12, 0
      %p93 = por %p91, %p92
      %p94 = scmp.ne.s32.totalorder %s83, %s86
      %p95 = scmp.eq.s32.totalorder %s17, 1
      %p96 = por %p94, %p95
      %p97 = scmp.ne.s32.totalorder %s86, %s87
      %p98 = scmp.eq.s32.totalorder %s17, 0
      %p99 = por %p97, %p98
      %p100 = scmp.ne.s32.totalorder %s86, %s87
      %p101 = scmp.eq.s32.totalorder %s18, 1
      %p102 = por %p100, %p101
      %p104 = scmp.ne.s32.totalorder %s87, %s103
      %p105 = scmp.eq.s32.totalorder %s18, 0
      %p106 = por %p104, %p105
      %p107 = scmp.le.s32.totalorder 1, %s12
      %p108 = scmp.lt.s32.totalorder %s12, 3
      %p109 = pnand %p107, %p108
      %p110 = pneg %p109
      // Predicated region
      $region9: #{forward.1} parent=5 // pred_check
        _
      $region10: #{forward.1} parent=5 // pred_check_branch
        %112 = sbr.rel (%p109) target = $region12
      $region11: #{forward.1} parent=5 // pred_region
        %s113 = ssub.s32 %s12, 1
        // Predicated region
        $region13: #{forward.1} parent=11 // pred_check
          %p114 = pneg %p71
        $region14: #{forward.1} parent=11 // pred_check_branch
          %116 = sbr.rel (%p114) target = $region16
        $region15: #{forward.1} parent=11 // pred_region
          %s118 = ssub.s32 512, 512
          %119 = vsyncadd [#allocation6], %s118
          %s120 = sshll.u32 [#allocation5], 4
          %s121 = int_to_ptr.vmem [resolvable:$true] %s120
          %126 = dma.hbm_to_vmem [thread:$0]  %s1, 512, %s121, [#allocation6], 128, 128, 8
        $region16: #{forward.1} parent=11 // pred_fallthru
          _
      $region12: #{forward.1} parent=5 // pred_fallthru
        _
      %p127 = scmp.lt.s32.totalorder %s12, 2
      // Predicated region
      $region17: #{forward.1} parent=5 // pred_check
        %p128 = pneg %p127
      $region18: #{forward.1} parent=5 // pred_check_branch
        %130 = sbr.rel (%p128) target = $region20
      $region19: #{forward.1} parent=5 // pred_region
        // Predicated region
        $region21: #{forward.1} parent=19 // pred_check
          %p131 = pneg %p44
        $region22: #{forward.1} parent=19 // pred_check_branch
          %133 = sbr.rel (%p131) target = $region24
        $region23: #{forward.1} parent=19 // pred_region
          %s134 = sand.u32 %s34, 1
          %s135 = scalar_lea.sflag [#allocation4], %s134
          %s136 = sand.u32 %s34, 1
          %s137 = smul.addr %s136, 4
          %s138 = scalar_lea.vmem [#allocation3], %s137
          %s140 = ssub.s32 64, 64
          %141 = vsyncadd %s135, %s140
          %s142 = smul.addr %s19, 64
          %s143 = scalar_lea.hbm %s0, %s142
          %s145 = sshll.u32 %s138, 4
          %s146 = int_to_ptr.vmem [resolvable:$true] %s145
          %148 = dma.hbm_to_vmem [thread:$0]  %s143, 64, %s146, %s135
        $region24: #{forward.1} parent=19 // pred_fallthru
          _
      $region20: #{forward.1} parent=5 // pred_fallthru
        _
      %p149 = scmp.le.s32.totalorder 1, %s12
      %p150 = scmp.lt.s32.totalorder %s12, 3
      %p151 = pnand %p149, %p150
      %p152 = pneg %p151
      // Predicated region
      $region25: #{forward.1} parent=5 // pred_check
        _
      $region26: #{forward.1} parent=5 // pred_check_branch
        %154 = sbr.rel (%p151) target = $region28
      $region27: #{forward.1} parent=5 // pred_region
        %s155 = ssub.s32 %s12, 1
        %s156 = sand.u32 %s37, 1
        %s157 = scalar_lea.sflag [#allocation4], %s156
        %s158 = sand.u32 %s37, 1
        %s159 = smul.addr %s158, 4
        %s160 = scalar_lea.vmem [#allocation3], %s159
        // Predicated region
        $region29: #{forward.1} parent=27 // pred_check
          %p161 = pneg %p50
        $region30: #{forward.1} parent=27 // pred_check_branch
          %163 = sbr.rel (%p161) target = $region32
        $region31: #{forward.1} parent=27 // pred_region
          %164 = dma.done %s157, 64
        $region32: #{forward.1} parent=27 // pred_fallthru
          _
        // Predicated region
        $region33: #{forward.1} parent=27 // pred_check
          %p165 = pneg %p71
        $region34: #{forward.1} parent=27 // pred_check_branch
          %167 = sbr.rel (%p165) target = $region36
        $region35: #{forward.1} parent=27 // pred_region
          %168 = dma.done [#allocation6], 512
        $region36: #{forward.1} parent=27 // pred_fallthru
          _
        %s169 = sand.u32 %s37, 1
        %s170 = scalar_lea.sflag [#allocation4], %s169
        %s171 = sand.u32 %s37, 1
        %s172 = smul.addr %s171, 4
        %s173 = scalar_lea.vmem [#allocation3], %s172
        %p174 = pneg %p50
        %p175 = pneg %p47
        %p176 = pneg %p71
        %p177 = pneg %p68
        %p178 = pneg %p99
        %p179 = pneg %p96
        %p180 = scmp.lt.s32.totalorder %s21, 1
        %s181 = scalar_select %p180, %s21, 1
        %p182 = scmp.lt.s32.totalorder %s22, 0
        %s183 = scalar_select %p182, %s22, 0
        %s184 = smul.addr %s181, 4
        %s185 = sadd.s32 %s183, %s184
        %s186 = smul.addr %s185, 8
        %s187 = scalar_lea.vmem %s2, %s186
        %p188 = scmp.lt.s32.totalorder %s21, 1
        %s189 = scalar_select %p188, %s21, 1
        %p190 = scmp.lt.s32.totalorder %s22, 0
        %s191 = scalar_select %p190, %s22, 0
        %s192 = smul.addr %s189, 4
        %s193 = sadd.s32 %s191, %s192
        %s194 = smul.addr %s193, 8
        %s195 = scalar_lea.vmem %s2, %s194
        %p196 = scmp.eq.s32.totalorder %s22, 0
        // Predicated region
        $region37: #{forward.1} parent=27 // pred_check
          %p197 = pneg %p196
        $region38: #{forward.1} parent=27 // pred_check_branch
          %199 = sbr.rel (%p197) target = $region40
        $region39: #{forward.1} parent=27 // pred_region
          %vm200 = vcmask 183296
          %201 = vst.msk [vmem:[#allocation2] sm:$0xf] %vm200, 0.0
          %v202 = vld [vmem:[%s160] sm:$0xf]
          %204 = vrot.lane.b32.xlu0 %v202, 4
          %v205 = vpop.permute.xlu0 %204
          %vm207 = vcmask 158752
          %208 = vst.msk [vmem:[#allocation2] sm:$0xf] %vm207, %v205
        $region40: #{forward.1} parent=27 // pred_fallthru
          _
        %v209 = vld [vmem:[#allocation2] sm:$0xf]
        %v211 = vrot.slane %v209, 4
        %212 = vrot.lane.b32.xlu0 %v211, 127
        %v213 = vpop.permute.xlu0 %212
        %215 = vrot.lane.b32.xlu0 %v209, 126
        %v216 = vpop.permute.xlu0 %215
        %218 = vrot.lane.b32.xlu0 %v211, 125
        %v219 = vpop.permute.xlu0 %218
        %221 = vrot.lane.b32.xlu0 %v209, 124
        %v222 = vpop.permute.xlu0 %221
        %224 = vrot.lane.b32.xlu0 %v211, 123
        %v225 = vpop.permute.xlu0 %224
        %227 = vrot.lane.b32.xlu0 %v209, 122
        %v228 = vpop.permute.xlu0 %227
        %230 = vrot.lane.b32.xlu0 %v211, 121
        %v231 = vpop.permute.xlu0 %230
        %vm233 = vcmask 1043456
        %v234 = vsel %vm233, %v209, %v213
        %v235 = vsel %vm233, %v216, %v219
        %v236 = vsel %vm233, %v222, %v225
        %v237 = vsel %vm233, %v228, %v231
        %v238 = vld [vmem:[#allocation5] sm:$0xff]
        %v239 = vld [vmem:[#allocation5 + $0x8] sm:$0xff]
        %v240 = vld [vmem:[#allocation5 + $0x10] sm:$0xff]
        %v241 = vld [vmem:[#allocation5 + $0x18] sm:$0xff]
        %vm242 = vcmask 269312
        %v244 = vsel %vm242, %v238, 0
        %v247 = vsel %vm242, %v239, 0
        %v250 = vsel %vm242, %v240, 0
        %v253 = vsel %vm242, %v241, 0
        %vm255 = vcmask 1040384
        %v257 = vsel %vm255, 1.0, 0
        %259 = vmatprep.subr.mxu0 0.0
        %260 = vmatpush1.msra.mxu0 %v234
        %261 = vmatprep.subr.mxu0 0.0
        %262 = vmatpush1.msra.mxu0 %v235
        %263 = vmatprep.subr.mxu0 0.0
        %264 = vmatpush1.msra.mxu0 %v236
        %265 = vmatprep.subr.mxu0 0.0
        %266 = vmatpush1.msra.mxu0 %v237
        %267 = vmatprep.subr.mxu0 0.0
        %268 = vmatpush1.msra.mxu0 %v257
        %269 = vmatprep.subr.mxu0 0.0
        %270 = vmatpush1.msra.mxu0 0.0
        %271 = vmatprep.subr.mxu0 0.0
        %272 = vmatpush1.msra.mxu0 0.0
        %273 = vmatprep.subr.mxu0 0.0
        %274 = vmatpush1.msra.mxu0 0.0
        %275 = vmatprep.subr.mxu0 0.0
        %276 = vmatpush1.msra.mxu0 0.0
        %277 = vmatprep.subr.mxu0 0.0
        %278 = vmatpush1.msra.mxu0 0.0
        %279 = vmatprep.subr.mxu0 0.0
        %280 = vmatpush1.msra.mxu0 0.0
        %281 = vmatprep.subr.mxu0 0.0
        %282 = vmatpush1.msra.mxu0 0.0
        %283 = vmatprep.subr.mxu0 0.0
        %284 = vmatpush1.msra.mxu0 0.0
        %285 = vmatprep.subr.mxu0 0.0
        %286 = vmatpush1.msra.mxu0 0.0
        %287 = vmatprep.subr.mxu0 0.0
        %288 = vmatpush1.msra.mxu0 0.0
        %289 = vmatprep.subr.mxu0 0.0
        %290 = vmatpush1.msra.mxu0 0.0
        %291 = vmatprep.subr.mxu0 0.0
        %292 = vmatpush1.msra.mxu0 0.0
        %293 = vmatprep.subr.mxu0 0.0
        %294 = vmatpush1.msra.mxu0 0.0
        %295 = vmatprep.subr.mxu0 0.0
        %296 = vmatpush1.msra.mxu0 0.0
        %297 = vmatprep.subr.mxu0 0.0
        %298 = vmatpush1.msra.mxu0 0.0
        %299 = vmatprep.subr.mxu0 0.0
        %300 = vmatpush1.msra.mxu0 0.0
        %301 = vmatprep.subr.mxu0 0.0
        %302 = vmatpush1.msra.mxu0 0.0
        %303 = vmatprep.subr.mxu0 0.0
        %304 = vmatpush1.msra.mxu0 0.0
        %305 = vmatprep.subr.mxu0 0.0
        %306 = vmatpush1.msra.mxu0 0.0
        %307 = vmatprep.subr.mxu0 0.0
        %308 = vmatpush1.msra.mxu0 0.0
        %309 = vmatprep.subr.mxu0 0.0
        %310 = vmatpush1.msra.mxu0 0.0
        %311 = vmatprep.subr.mxu0 0.0
        %312 = vmatpush1.msra.mxu0 0.0
        %313 = vmatprep.subr.mxu0 0.0
        %314 = vmatpush1.msra.mxu0 0.0
        %315 = vmatprep.subr.mxu0 0.0
        %316 = vmatpush1.msra.mxu0 0.0
        %317 = vmatprep.subr.mxu0 0.0
        %318 = vmatpush1.msra.mxu0 0.0
        %319 = vmatprep.subr.mxu0 0.0
        %320 = vmatpush1.msra.mxu0 0.0
        %321 = vmatprep.subr.mxu0 0.0
        %322 = vmatpush1.msra.mxu0 0.0
        %323 = vmatprep.mubr.f32.mxu0 0.0
        %324 = vmatmul.mubr.f32.gmra.mrb[0].mxu0 %v244
        %v325 = vpop.f32.mrb[0].mxu0
        %v326 = vadd.f32 0.0, %v325
        %v327 = vpop.f32.mrb[0].mxu0
        %328 = vmatprep.mubr.f32.mxu0 0.0
        %329 = vmatmul.mubr.f32.gmra.mrb[0].mxu0 %v247
        %v330 = vpop.f32.mrb[0].mxu0
        %v331 = vadd.f32 0.0, %v330
        %v332 = vpop.f32.mrb[0].mxu0
        %333 = vmatprep.mubr.f32.mxu0 0.0
        %334 = vmatmul.mubr.f32.gmra.mrb[0].mxu0 %v250
        %v335 = vpop.f32.mrb[0].mxu0
        %v336 = vadd.f32 0.0, %v335
        %v337 = vpop.f32.mrb[0].mxu0
        %338 = vmatprep.mubr.f32.mxu0 0.0
        %339 = vmatmul.mubr.f32.gmra.mrb[0].mxu0 %v253
        %v340 = vpop.f32.mrb[0].mxu0
        %v341 = vadd.f32 0.0, %v340
        %v342 = vpop.f32.mrb[0].mxu0
        %343 = vdwg.mxu0
        %v344 = vmul.f32 %v326, 0.5
        %v345 = vmul.f32 %v331, 0.5
        %v346 = vmul.f32 %v336, 0.5
        %v347 = vmul.f32 %v341, 0.5
        %v348 = vmul.f32 %v326, 0.70710677
        %v349 = vmul.f32 %v331, 0.70710677
        %v350 = vmul.f32 %v336, 0.70710677
        %v351 = vmul.f32 %v341, 0.70710677
        %v352 = verf.f32.pop %v348
        %v353 = verf.f32.pop %v349
        %v354 = verf.f32.pop %v350
        %v355 = verf.f32.pop %v351
        %v356 = vadd.f32 %v352, 1.0
        %v357 = vadd.f32 %v353, 1.0
        %v358 = vadd.f32 %v354, 1.0
        %v359 = vadd.f32 %v355, 1.0
        %v360 = vmul.f32 %v344, %v356
        %v361 = vmul.f32 %v345, %v357
        %v362 = vmul.f32 %v346, %v358
        %v363 = vmul.f32 %v347, %v359
        %vm364 = vcmask 130048
        %365 = vst.msk [vmem:[%s195] sm:$0xff] %vm364, %v360
        %366 = vst.msk [vmem:[%s195 + $0x8] sm:$0xff] %vm364, %v361
        %367 = vst.msk [vmem:[%s195 + $0x10] sm:$0xff] %vm364, %v362
        %368 = vst.msk [vmem:[%s195 + $0x18] sm:$0xff] %vm364, %v363
        %p369 = scmp.lt.s32.totalorder %s21, 1
        %s370 = scalar_select %p369, %s21, 1
        %p371 = scmp.lt.s32.totalorder %s22, 0
        %s372 = scalar_select %p371, %s22, 0
        %s373 = smul.addr %s370, 4
        %s374 = sadd.s32 %s372, %s373
        %s375 = smul.addr %s374, 8
        %s376 = scalar_lea.vmem %s2, %s375
        // Predicated region
        $region41: #{forward.1} parent=27 // pred_check
          %p377 = pneg %p96
        $region42: #{forward.1} parent=27 // pred_check_branch
          %379 = sbr.rel (%p377) target = $region44
        $region43: #{forward.1} parent=27 // pred_region
          _
        $region44: #{forward.1} parent=27 // pred_fallthru
          _
      $region28: #{forward.1} parent=5 // pred_fallthru
        _
      %p380 = scmp.le.s32.totalorder 2, %s12
      // Predicated region
      $region45: #{forward.1} parent=5 // pred_check
        %p381 = pneg %p380
      $region46: #{forward.1} parent=5 // pred_check_branch
        %383 = sbr.rel (%p381) target = $region48
      $region47: #{forward.1} parent=5 // pred_region
        %s384 = ssub.s32 %s12, 2
        // Predicated region
        $region49: #{forward.1} parent=47 // pred_check
          %p385 = pneg %p102
        $region50: #{forward.1} parent=47 // pred_check_branch
          %387 = sbr.rel (%p385) target = $region52
        $region51: #{forward.1} parent=47 // pred_region
          %p388 = scmp.lt.s32.totalorder %s23, 1
          %s389 = scalar_select %p388, %s23, 1
          %p390 = scmp.lt.s32.totalorder %s24, 0
          %s391 = scalar_select %p390, %s24, 0
          %s392 = smul.addr %s389, 4
          %s393 = sadd.s32 %s391, %s392
          %s394 = smul.addr %s393, 8
          %s395 = scalar_lea.vmem %s2, %s394
        $region52: #{forward.1} parent=47 // pred_fallthru
          _
      $region48: #{forward.1} parent=5 // pred_fallthru
        _
    $region6: #{forward.1} parent=1 // loop_footer
      %s16 = sadd.s32 1, %s12
    $region7: #{forward.1} parent=1 // loop_footer_branch
      %11 = sbr.rel target = $region3
    $region8: #{forward.1} parent=1 // loop_exit
      _
    %396 = vsyncpa [#allocation4], 1
    %s397 = scalar_lea.sflag [#allocation4], 1
    %398 = vsyncpa %s397, 1
    %399 = vsyncpa [#allocation6], 1

</llo_original>
